<compile_context>
chip_gen: v7x
topology: tpu7x:2x2x1
jax: 0.10.0
libtpu: 0.0.40
codegen_flags: <defaults>
</compile_context>

<pallas_src>
import functools

import jax
import jax.numpy as jnp
from jax.experimental import pallas as pl
from jax.experimental.pallas import tpu as pltpu

_LANES = 128
_TILE_BYTES_TARGET = 2 * 1024 * 1024  # ~2 MiB per tile buffer (f32)


def _gd_hw_prng_kernel(seed_ref, x_ref, o_ref, *, alpha):
    """TPU path: draw epsilon with the hardware PRNG, seeded per tile."""
    pltpu.prng_seed(seed_ref[0] + pl.program_id(0))
    eps = pltpu.stateful_normal(x_ref.shape, jnp.float32) * alpha + 1.0
    o_ref[...] = (x_ref[...].astype(jnp.float32) * eps).astype(o_ref.dtype)


def _gd_mul_kernel(x_ref, eps_ref, o_ref, *, alpha):
    """Portable path: standard-normal epsilon supplied as a second input."""
    eps = eps_ref[...].astype(jnp.float32) * alpha + 1.0
    o_ref[...] = (x_ref[...].astype(jnp.float32) * eps).astype(o_ref.dtype)


def _slab_geometry(n):
    """Pick a lane-dense width W (multiple of 128) and needed pad for flat size n."""
    for w in (2048, 1024, 512, 256, 128):
        if n % w == 0:
            return w, 0
    w = _LANES
    return w, (-n) % w  # rare fallback; pad is < 128 elements of logical size


def _row_tile(rows, w):
    """Rows per block: ~2 MiB per f32 buffer, sublane-aligned unless full extent."""
    tile = max(1, min(rows, _TILE_BYTES_TARGET // (w * 4)))
    if tile < rows:
        tile = max(8, (tile // 8) * 8)
    return tile


@functools.partial(jax.jit, static_argnames=("alpha",))
def gaussian_dropout(x, seed, alpha=1.0):
    """out = x * (randn_like(x) * alpha + 1), matching the PyTorch module."""
    orig_shape, orig_dtype = x.shape, x.dtype
    n = x.size
    w, pad = _slab_geometry(n)

    flat = x.reshape(-1)
    if pad:
        flat = jnp.pad(flat, (0, pad))
    rows = (n + pad) // w
    x2 = flat.reshape(rows, w)

    tile_r = _row_tile(rows, w)
    grid = (pl.cdiv(rows, tile_r),)
    blk = pl.BlockSpec((tile_r, w), lambda i: (i, 0))
    out_shape = jax.ShapeDtypeStruct((rows, w), orig_dtype)

    if jax.default_backend() == "tpu":
        # In-kernel hardware PRNG: no extra HBM pass for the noise tensor.
        seed_arr = jnp.asarray([seed], dtype=jnp.int32)
        out2 = pl.pallas_call(
            functools.partial(_gd_hw_prng_kernel, alpha=float(alpha)),
            out_shape=out_shape,
            grid_spec=pltpu.PrefetchScalarGridSpec(
                num_scalar_prefetch=1,
                grid=grid,
                in_specs=[pl.BlockSpec((tile_r, w), lambda i, seed_ref: (i, 0))],
                out_specs=pl.BlockSpec((tile_r, w), lambda i, seed_ref: (i, 0)),
            ),
            compiler_params=pltpu.CompilerParams(
                dimension_semantics=("parallel",),
            ),
        )(seed_arr, x2)
    else:
        # TODO(synk): pltpu.prng_seed / pltpu.stateful_normal have no lowering
        # off-TPU (interpret mode); generate N(0,1) with jax.random and fuse
        # the scale/shift/multiply in a plain tiled elementwise kernel.
        eps = jax.random.normal(jax.random.PRNGKey(seed), (rows, w), dtype=jnp.float32)
        out2 = pl.pallas_call(
            functools.partial(_gd_mul_kernel, alpha=float(alpha)),
            out_shape=out_shape,
            grid=grid,
            in_specs=[blk, blk],
            out_specs=blk,
        )(x2, eps)

    if pad:
        out2 = out2.reshape(-1)[:n]
    return out2.reshape(orig_shape)


if __name__ == "__main__":
    key = jax.random.PRNGKey(0)
    # Small NCHW input consistent with typical conv-feature usage.
    x = jax.random.normal(key, (2, 4, 16, 16), dtype=jnp.float32)

    out = gaussian_dropout(x, seed=42, alpha=1.0)
    out = jax.block_until_ready(out)

    # Sanity checks: shape/dtype preserved; values finite; noise actually applied.
    assert out.shape == x.shape
    assert out.dtype == x.dtype
    assert bool(jnp.all(jnp.isfinite(out)))
    assert bool(jnp.any(out != x))  # alpha=1 => multiplicative noise changes values

    print("KERNEL_OK")
</pallas_src>

<mosaic_0001>
module attributes {stable_mosaic.version = 11 : i64} {
  func.func @_gd_mul_kernel(%arg0: i32, %arg1: memref<1x2048xf32, #tpu.memory_space<vmem>>, %arg2: memref<1x2048xf32, #tpu.memory_space<vmem>>, %arg3: memref<1x2048xf32, #tpu.memory_space<vmem>>) attributes {dimension_semantics = [#tpu.dimension_semantics<arbitrary>], iteration_bounds = array<i64: 1>, scalar_prefetch = 0 : i64, scratch_operands = 0 : i64, tpu.core_type = #tpu.core_type<tc>, window_params = [{transform_indices = @transform_0, window_bounds = array<i64: 1, 2048>}, {transform_indices = @transform_1, window_bounds = array<i64: 1, 2048>}, {transform_indices = @transform_2, window_bounds = array<i64: 1, 2048>}]} {
    %c0 = arith.constant 0 : index
    %c0_0 = arith.constant 0 : index
    %0 = vector.load %arg2[%c0, %c0_0] : memref<1x2048xf32, #tpu.memory_space<vmem>>, vector<1x2048xf32>
    %cst = arith.constant 1.000000e+00 : f32
    %1 = vector.broadcast %cst : f32 to vector<1x2048xf32>
    %2 = arith.mulf %0, %1 : vector<1x2048xf32>
    %cst_1 = arith.constant 1.000000e+00 : f32
    %3 = vector.broadcast %cst_1 : f32 to vector<1x2048xf32>
    %4 = arith.addf %2, %3 : vector<1x2048xf32>
    %c0_2 = arith.constant 0 : index
    %c0_3 = arith.constant 0 : index
    %5 = vector.load %arg1[%c0_2, %c0_3] : memref<1x2048xf32, #tpu.memory_space<vmem>>, vector<1x2048xf32>
    %6 = arith.mulf %5, %4 : vector<1x2048xf32>
    %c0_4 = arith.constant 0 : index
    %c0_5 = arith.constant 0 : index
    %7 = vector.load %arg3[%c0_4, %c0_5] : memref<1x2048xf32, #tpu.memory_space<vmem>>, vector<1x2048xf32>
    tpu.vector_store %arg3[%c0_4, %c0_5], %6 {strides = array<i32>} : memref<1x2048xf32, #tpu.memory_space<vmem>>, vector<1x2048xf32>,
    return
  }
  func.func @transform_0(%arg0: i32) -> (i32, i32) {
    %c0_i32 = arith.constant 0 : i32
    %c0_i32_0 = arith.constant 0 : i32
    return %arg0, %c0_i32 : i32, i32
  }
  func.func @transform_1(%arg0: i32) -> (i32, i32) {
    %c0_i32 = arith.constant 0 : i32
    %c0_i32_0 = arith.constant 0 : i32
    return %arg0, %c0_i32 : i32, i32
  }
  func.func @transform_2(%arg0: i32) -> (i32, i32) {
    %c0_i32 = arith.constant 0 : i32
    %c0_i32_0 = arith.constant 0 : i32
    return %arg0, %c0_i32 : i32, i32
  }
}

</mosaic_0001>

<llo_original>
// kernel: gaussian_dropout.1
$region0: #{gaussian_dropout.1}
  #allocation0 [shape = 'u32[]', space=smem, size = 0x4, offset = 0x4, fixed_abs, tag = 'smem constant byte address 0x4 - core index']
  #allocation1 [shape = 'u32[144,128]{1,0:T(1,128)}', space=vmem, size = 0x12000, scoped, tag = 'internal scratch']
  %s0 = inlined_call_operand.vmem [shape: f32[1,2048], index: 0, kind: input, shape index: {}]
  %s1 = inlined_call_operand.vmem [shape: f32[1,2048], index: 1, kind: input, shape index: {}]
  %s2 = inlined_call_operand.vmem [shape: f32[1,2048], index: 2, kind: output, shape index: {}]
  %s3 = sld [smem:[#allocation0]]
  $region18: #{gaussian_dropout.1} parent=0
    _
  %s5 = ssub.s32 1, %s3
  %s6 = scalar_select 0, %s5, %s3
  // Predicated region
  $region2: #{gaussian_dropout.1} parent=0 // pred_check
    _
  $region3: #{gaussian_dropout.1} parent=0 // pred_check_branch
    %8 = sbr.rel (0) target = $region5
  $region4: #{gaussian_dropout.1} parent=0 // pred_region
    _
  $region5: #{gaussian_dropout.1} parent=0 // pred_fallthru
    _
  // Predicated region
  $region6: #{gaussian_dropout.1} parent=0 // pred_check
    _
  $region7: #{gaussian_dropout.1} parent=0 // pred_check_branch
    %10 = sbr.rel (0) target = $region9
  $region8: #{gaussian_dropout.1} parent=0 // pred_region
    _
  $region9: #{gaussian_dropout.1} parent=0 // pred_fallthru
    _
  %v11 = vld [vmem:[%s1] sm:$0xff]
  %v12 = vld [vmem:[%s1 + $0x8] sm:$0xff]
  %v13 = vadd.f32 %v11, 1.0
  %v14 = vadd.f32 %v12, 1.0
  %v15 = vld [vmem:[%s0] sm:$0xff]
  %v16 = vld [vmem:[%s0 + $0x8] sm:$0xff]
  %v17 = vmul.f32 %v15, %v13
  %v18 = vmul.f32 %v16, %v14
  %19 = vst [vmem:[%s2] sm:$0xff] %v17
  %20 = vst [vmem:[%s2 + $0x8] sm:$0xff] %v18
  // Predicated region
  $region10: #{gaussian_dropout.1} parent=0 // pred_check
    _
  $region11: #{gaussian_dropout.1} parent=0 // pred_check_branch
    %22 = sbr.rel (0) target = $region13
  $region12: #{gaussian_dropout.1} parent=0 // pred_region
    _
  $region13: #{gaussian_dropout.1} parent=0 // pred_fallthru
    _
  // Predicated region
  $region14: #{gaussian_dropout.1} parent=0 // pred_check
    _
  $region15: #{gaussian_dropout.1} parent=0 // pred_check_branch
    %24 = sbr.rel (0) target = $region17
  $region16: #{gaussian_dropout.1} parent=0 // pred_region
    _
  $region17: #{gaussian_dropout.1} parent=0 // pred_fallthru
    _

</llo_original>
